<compile_context>
chip_gen: v7x
topology: tpu7x:2x2x1
jax: 0.10.0
libtpu: 0.0.40
codegen_flags: <defaults>
</compile_context>

<pallas_src>
import functools

import jax
import jax.numpy as jnp
from jax.experimental import pallas as pl
from jax.experimental.pallas import tpu as pltpu

_LANE = 128


def _round_up(x, m):
    return (x + m - 1) // m * m


def _cdiv(a, b):
    return -(-a // b)


# ----------------------------------------------------------------------------
# Fused kernel: all layers + proj_nutr, activation never leaves VMEM/vregs.
# ----------------------------------------------------------------------------
def _fused_encoder_kernel(*refs, num_layers, has_proj0, out_dim,
                          dout_p, h_p, eps):
    x_ref, vec_ref = refs[0], refs[1]
    o_ref = refs[-1]
    w_it = iter(refs[2:-1])

    x = x_ref[...].astype(jnp.float32)            # (TILE_B, Din_p)
    inv_d = 1.0 / float(out_dim)

    row_ctr = [0]

    def vec(width):
        r = row_ctr[0]
        row_ctr[0] += 1
        return vec_ref[r:r + 1, :width]           # (1, width), f32

    def layer_norm(y, g, bt):
        # Padded lanes of y are exactly 0, so unmasked sums with inv_d are the
        # true statistics over the real out_dim features.
        mean = jnp.sum(y, axis=-1, keepdims=True) * inv_d
        var = jnp.sum(y * y, axis=-1, keepdims=True) * inv_d - mean * mean
        var = jnp.maximum(var, 0.0)
        # Padded gamma/beta columns are 0 -> padded lanes become exactly 0.
        return (y - mean) * jax.lax.rsqrt(var + eps) * g + bt

    # ---- Layer 0 (projection fused with linear1 when present) ----
    xb = x.astype(jnp.bfloat16)
    if has_proj0:
        wcat = next(w_it)[...]                    # (Din_p, dout_p + h_p), bf16
        ph = jnp.dot(xb, wcat, preferred_element_type=jnp.float32)
        bp = vec(dout_p)
        b1 = vec(h_p)
        resid = ph[:, :dout_p] + bp
        h = jnp.maximum(ph[:, dout_p:] + b1, 0.0)
    else:
        w1 = next(w_it)[...]                      # (Din_p, h_p), bf16
        b1 = vec(h_p)
        resid = x                                 # nn.Identity: no matmul
        h = jnp.maximum(
            jnp.dot(xb, w1, preferred_element_type=jnp.float32) + b1, 0.0)

    w2 = next(w_it)[...]
    b2 = vec(dout_p)
    # Dropout: eval-mode identity.
    mlp = jnp.dot(h.astype(jnp.bfloat16), w2,
                  preferred_element_type=jnp.float32) + b2
    g = vec(dout_p)
    bt = vec(dout_p)
    x = layer_norm(resid + mlp, g, bt)

    # ---- Layers 1 .. num_layers-1 (identity projection: resid = x) ----
    for _ in range(1, num_layers):
        w1 = next(w_it)[...]
        b1 = vec(h_p)
        w2 = next(w_it)[...]
        b2 = vec(dout_p)
        g = vec(dout_p)
        bt = vec(dout_p)

        xb = x.astype(jnp.bfloat16)
        h = jnp.maximum(
            jnp.dot(xb, w1, preferred_element_type=jnp.float32) + b1, 0.0)
        mlp = jnp.dot(h.astype(jnp.bfloat16), w2,
                      preferred_element_type=jnp.float32) + b2
        x = layer_norm(x + mlp, g, bt)

    # ---- Final proj_nutr ----
    wn = next(w_it)[...]
    bn = vec(dout_p)
    out = jnp.dot(x.astype(jnp.bfloat16), wn,
                  preferred_element_type=jnp.float32) + bn
    o_ref[...] = out.astype(o_ref.dtype)


# ----------------------------------------------------------------------------
# One-time parameter preparation: pad to lane-dense shapes, cast weights bf16,
# fuse layer-0 [Wp | W1], pack all 1-D vectors into one table.
# ----------------------------------------------------------------------------
def prepare_encoder_params(params, compute_dtype=jnp.bfloat16):
    blocks = params["blocks"]
    wn, bn = params["proj_nutr"]
    in_dim = blocks[0]["w1"].shape[0]
    hidden_dim = blocks[0]["w1"].shape[1]
    out_dim = wn.shape[1]
    num_layers = len(blocks)
    has_proj0 = "wp" in blocks[0]

    din_p = _round_up(in_dim, _LANE)
    h_p = _round_up(hidden_dim, _LANE)
    dout_p = _round_up(out_dim, _LANE)
    vec_w = max(h_p, dout_p)

    def pad_w(a, rows, cols):
        out = jnp.zeros((rows, cols), compute_dtype)
        return out.at[:a.shape[0], :a.shape[1]].set(a.astype(compute_dtype))

    weights = []
    vec_rows = []

    def add_vec(a):
        row = jnp.zeros((vec_w,), jnp.float32)
        vec_rows.append(row.at[:a.size].set(a.reshape(-1).astype(jnp.float32)))

    blk0 = blocks[0]
    if has_proj0:
        weights.append(jnp.concatenate(
            [pad_w(blk0["wp"], din_p, dout_p), pad_w(blk0["w1"], din_p, h_p)],
            axis=1))
        add_vec(blk0["bp"])
    else:
        weights.append(pad_w(blk0["w1"], din_p, h_p))
    add_vec(blk0["b1"])
    weights.append(pad_w(blk0["w2"], h_p, dout_p))
    add_vec(blk0["b2"])
    add_vec(blk0["gamma"])
    add_vec(blk0["beta"])

    for blk in blocks[1:]:
        weights.append(pad_w(blk["w1"], dout_p, h_p))
        add_vec(blk["b1"])
        weights.append(pad_w(blk["w2"], h_p, dout_p))
        add_vec(blk["b2"])
        add_vec(blk["gamma"])
        add_vec(blk["beta"])

    weights.append(pad_w(wn, dout_p, dout_p))
    add_vec(bn)

    n_rows = _round_up(len(vec_rows), 8)
    vec_tbl = jnp.zeros((n_rows, vec_w), jnp.float32)
    vec_tbl = vec_tbl.at[:len(vec_rows)].set(jnp.stack(vec_rows))

    meta = dict(in_dim=in_dim, hidden_dim=hidden_dim, out_dim=out_dim,
                num_layers=num_layers, has_proj0=has_proj0,
                din_p=din_p, h_p=h_p, dout_p=dout_p)
    return {"weights": tuple(weights), "vec": vec_tbl, "meta": meta}


def _choose_tiling(B, tile_b):
    if tile_b is not None:
        return tile_b, _round_up(B, tile_b)
    max_tile = 1024                                  # VMEM headroom is ample
    n_tiles = max(_cdiv(B, max_tile), 1)
    if B > 8:
        n_tiles = max(n_tiles, 2)                    # keep both v7x TCs busy
    if n_tiles > 1 and (n_tiles % 2):
        n_tiles += 1                                 # even split for megacore
    tile_b = _round_up(_cdiv(B, n_tiles), 8)         # minimize padded rows
    return tile_b, _round_up(B, tile_b)


# ----------------------------------------------------------------------------
# Wrapper: single pallas_call with a batch grid; weights stay VMEM-resident.
# ----------------------------------------------------------------------------
def deep_nutr_encoder(x, prepared, eps=1e-5, tile_b=None):
    meta = prepared["meta"]
    B = x.shape[0]
    in_dim, out_dim = meta["in_dim"], meta["out_dim"]
    din_p, h_p, dout_p = meta["din_p"], meta["h_p"], meta["dout_p"]

    tile_b, b_pad = _choose_tiling(B, tile_b)

    x_p = jnp.zeros((b_pad, din_p), x.dtype).at[:B, :in_dim].set(x)

    inputs = [x_p, prepared["vec"], *prepared["weights"]]
    in_specs = [pl.BlockSpec((tile_b, din_p), lambda i: (i, 0)),
                pl.BlockSpec(prepared["vec"].shape, lambda i: (0, 0))]
    for w in prepared["weights"]:
        in_specs.append(pl.BlockSpec(w.shape, lambda i: (0, 0)))

    kernel = functools.partial(
        _fused_encoder_kernel,
        num_layers=meta["num_layers"], has_proj0=meta["has_proj0"],
        out_dim=out_dim, dout_p=dout_p, h_p=h_p, eps=eps)

    out_p = pl.pallas_call(
        kernel,
        out_shape=jax.ShapeDtypeStruct((b_pad, dout_p), x.dtype),
        grid_spec=pltpu.PrefetchScalarGridSpec(
            num_scalar_prefetch=0,
            grid=(b_pad // tile_b,),
            in_specs=in_specs,
            out_specs=pl.BlockSpec((tile_b, dout_p), lambda i: (i, 0)),
        ),
        compiler_params=pltpu.CompilerParams(
            dimension_semantics=("parallel",)),
    )(*inputs)

    return out_p[:B, :out_dim]


# ----------------------------------------------------------------------------
# Parameter construction (deterministic, synthetic; matches torch Linear init)
# ----------------------------------------------------------------------------
def _make_linear(key, d_in, d_out):
    kw, kb = jax.random.split(key)
    scale = 1.0 / jnp.sqrt(jnp.float32(d_in))
    w = jax.random.uniform(kw, (d_in, d_out), jnp.float32, -scale, scale)
    b = jax.random.uniform(kb, (1, d_out), jnp.float32, -scale, scale)
    return w, b


def make_params(key, in_dim, hidden_dim, out_dim, num_layers):
    params = {"blocks": []}
    keys = jax.random.split(key, num_layers + 1)
    for i in range(num_layers):
        d_in = in_dim if i == 0 else out_dim
        k1, k2, kp = jax.random.split(keys[i], 3)
        w1, b1 = _make_linear(k1, d_in, hidden_dim)
        w2, b2 = _make_linear(k2, hidden_dim, out_dim)
        blk = {"w1": w1, "b1": b1, "w2": w2, "b2": b2,
               "gamma": jnp.ones((1, out_dim), jnp.float32),
               "beta": jnp.zeros((1, out_dim), jnp.float32)}
        if d_in != out_dim:
            wp, bp = _make_linear(kp, d_in, out_dim)
            blk["wp"], blk["bp"] = wp, bp
        params["blocks"].append(blk)
    wn, bn = _make_linear(keys[-1], out_dim, out_dim)
    params["proj_nutr"] = (wn, bn)
    return params


# Pure-JAX f32 reference (unpadded) for sanity check.
def _reference(x, params, eps=1e-5):
    for p in params["blocks"]:
        resid = x @ p["wp"] + p["bp"] if "wp" in p else x
        h = jnp.maximum(x @ p["w1"] + p["b1"], 0.0)
        mlp = h @ p["w2"] + p["b2"]
        y = resid + mlp
        mean = jnp.mean(y, axis=-1, keepdims=True)
        var = jnp.mean((y - mean) ** 2, axis=-1, keepdims=True)
        x = (y - mean) * jax.lax.rsqrt(var + eps) * p["gamma"] + p["beta"]
    wn, bn = params["proj_nutr"]
    return x @ wn + bn


if __name__ == "__main__":
    key = jax.random.PRNGKey(0)
    k_x, k_p, k_x2 = jax.random.split(key, 3)

    B, in_dim, hidden_dim, out_dim, num_layers = 8, 16, 64, 32, 3
    params = make_params(k_p, in_dim, hidden_dim, out_dim, num_layers)
    prepared = prepare_encoder_params(params)          # pad/pack ONCE

    # Small case (single batch tile).
    x = jax.random.normal(k_x, (B, in_dim), jnp.float32)
    out = jax.block_until_ready(deep_nutr_encoder(x, prepared))
    ref = _reference(x, params)
    assert out.shape == (B, out_dim)
    # bf16 matmuls => looser tolerance vs. the f32 reference.
    assert jnp.allclose(out, ref, atol=5e-2, rtol=5e-2), (
        float(jnp.max(jnp.abs(out - ref))))

    # Larger case exercising the multi-tile ("parallel") batch grid.
    B2 = 200
    x2 = jax.random.normal(k_x2, (B2, in_dim), jnp.float32)
    out2 = jax.block_until_ready(deep_nutr_encoder(x2, prepared))
    ref2 = _reference(x2, params)
    assert out2.shape == (B2, out_dim)
    assert jnp.allclose(out2, ref2, atol=5e-2, rtol=5e-2), (
        float(jnp.max(jnp.abs(out2 - ref2))))

    print("KERNEL_OK")
</pallas_src>

<mosaic_0001>
module attributes {stable_mosaic.version = 11 : i64} {
  func.func @_fused_encoder_kernel(%arg0: i32, %arg1: memref<8x128xf32, #tpu.memory_space<vmem>>, %arg2: memref<16x128xf32, #tpu.memory_space<vmem>>, %arg3: memref<128x256xbf16, #tpu.memory_space<vmem>>, %arg4: memref<128x128xbf16, #tpu.memory_space<vmem>>, %arg5: memref<128x128xbf16, #tpu.memory_space<vmem>>, %arg6: memref<128x128xbf16, #tpu.memory_space<vmem>>, %arg7: memref<128x128xbf16, #tpu.memory_space<vmem>>, %arg8: memref<128x128xbf16, #tpu.memory_space<vmem>>, %arg9: memref<128x128xbf16, #tpu.memory_space<vmem>>, %arg10: memref<8x128xf32, #tpu.memory_space<vmem>>) attributes {dimension_semantics = [#tpu.dimension_semantics<parallel>], iteration_bounds = array<i64: 1>, scalar_prefetch = 0 : i64, scratch_operands = 0 : i64, tpu.core_type = #tpu.core_type<tc>, window_params = [{transform_indices = @transform_0, window_bounds = array<i64: 8, 128>}, {pipeline_mode = #tpu.pipeline_mode<synchronous>, transform_indices = @transform_1, window_bounds = array<i64: 16, 128>}, {pipeline_mode = #tpu.pipeline_mode<synchronous>, transform_indices = @transform_2, window_bounds = array<i64: 128, 256>}, {pipeline_mode = #tpu.pipeline_mode<synchronous>, transform_indices = @transform_3, window_bounds = array<i64: 128, 128>}, {pipeline_mode = #tpu.pipeline_mode<synchronous>, transform_indices = @transform_4, window_bounds = array<i64: 128, 128>}, {pipeline_mode = #tpu.pipeline_mode<synchronous>, transform_indices = @transform_5, window_bounds = array<i64: 128, 128>}, {pipeline_mode = #tpu.pipeline_mode<synchronous>, transform_indices = @transform_6, window_bounds = array<i64: 128, 128>}, {pipeline_mode = #tpu.pipeline_mode<synchronous>, transform_indices = @transform_7, window_bounds = array<i64: 128, 128>}, {pipeline_mode = #tpu.pipeline_mode<synchronous>, transform_indices = @transform_8, window_bounds = array<i64: 128, 128>}, {transform_indices = @transform_9, window_bounds = array<i64: 8, 128>}]} {
    %c0 = arith.constant 0 : index
    %c0_0 = arith.constant 0 : index
    %0 = vector.load %arg1[%c0, %c0_0] : memref<8x128xf32, #tpu.memory_space<vmem>>, vector<8x128xf32>
    %1 = arith.truncf %0 : vector<8x128xf32> to vector<8x128xbf16>
    %c0_1 = arith.constant 0 : index
    %c0_2 = arith.constant 0 : index
    %2 = vector.load %arg3[%c0_1, %c0_2] : memref<128x256xbf16, #tpu.memory_space<vmem>>, vector<128x256xbf16>
    %cst = arith.constant dense<0.000000e+00> : vector<8x256xf32>
    %3 = tpu.matmul %1, %2, %cst {dimension_numbers = #tpu.dot_dimension_numbers<[1], [0], [0], [1], [0, 0, 1, 1], [], []>} : vector<8x128xbf16>, vector<128x256xbf16>, vector<8x256xf32> -> vector<8x256xf32>
    %c0_3 = arith.constant 0 : index
    %c0_4 = arith.constant 0 : index
    %4 = vector.load %arg2[%c0_3, %c0_4] : memref<16x128xf32, #tpu.memory_space<vmem>>, vector<1x128xf32>
    %c1 = arith.constant 1 : index
    %c0_5 = arith.constant 0 : index
    %5 = vector.load %arg2[%c1, %c0_5] : memref<16x128xf32, #tpu.memory_space<vmem>>, vector<1x128xf32>
    %6 = vector.extract_strided_slice %3 {offsets = [0, 0], sizes = [8, 128], strides = [1, 1]} : vector<8x256xf32> to vector<8x128xf32>
    %7 = vector.broadcast %4 : vector<1x128xf32> to vector<8x128xf32>
    %8 = arith.addf %6, %7 : vector<8x128xf32>
    %9 = vector.extract_strided_slice %3 {offsets = [0, 128], sizes = [8, 128], strides = [1, 1]} : vector<8x256xf32> to vector<8x128xf32>
    %10 = vector.broadcast %5 : vector<1x128xf32> to vector<8x128xf32>
    %11 = arith.addf %9, %10 : vector<8x128xf32>
    %cst_6 = arith.constant 0.000000e+00 : f32
    %12 = vector.broadcast %cst_6 : f32 to vector<8x128xf32>
    %13 = arith.maximumf %11, %12 : vector<8x128xf32>
    %c0_7 = arith.constant 0 : index
    %c0_8 = arith.constant 0 : index
    %14 = vector.load %arg4[%c0_7, %c0_8] : memref<128x128xbf16, #tpu.memory_space<vmem>>, vector<128x128xbf16>
    %c2 = arith.constant 2 : index
    %c0_9 = arith.constant 0 : index
    %15 = vector.load %arg2[%c2, %c0_9] : memref<16x128xf32, #tpu.memory_space<vmem>>, vector<1x128xf32>
    %16 = arith.truncf %13 : vector<8x128xf32> to vector<8x128xbf16>
    %cst_10 = arith.constant dense<0.000000e+00> : vector<8x128xf32>
    %17 = tpu.matmul %16, %14, %cst_10 {dimension_numbers = #tpu.dot_dimension_numbers<[1], [0], [0], [1], [0, 0, 1, 1], [], []>} : vector<8x128xbf16>, vector<128x128xbf16>, vector<8x128xf32> -> vector<8x128xf32>
    %18 = vector.broadcast %15 : vector<1x128xf32> to vector<8x128xf32>
    %19 = arith.addf %17, %18 : vector<8x128xf32>
    %c3 = arith.constant 3 : index
    %c0_11 = arith.constant 0 : index
    %20 = vector.load %arg2[%c3, %c0_11] : memref<16x128xf32, #tpu.memory_space<vmem>>, vector<1x128xf32>
    %c4 = arith.constant 4 : index
    %c0_12 = arith.constant 0 : index
    %21 = vector.load %arg2[%c4, %c0_12] : memref<16x128xf32, #tpu.memory_space<vmem>>, vector<1x128xf32>
    %22 = arith.addf %8, %19 : vector<8x128xf32>
    %cst_13 = arith.constant dense<0.000000e+00> : vector<8xf32>
    %23 = vector.multi_reduction <add>, %22, %cst_13 [1] : vector<8x128xf32> to vector<8xf32>
    %24 = vector.shape_cast %23 : vector<8xf32> to vector<8x1xf32>
    %cst_14 = arith.constant 3.125000e-02 : f32
    %25 = vector.broadcast %cst_14 : f32 to vector<8x1xf32>
    %26 = arith.mulf %24, %25 : vector<8x1xf32>
    %27 = arith.mulf %22, %22 : vector<8x128xf32>
    %cst_15 = arith.constant dense<0.000000e+00> : vector<8xf32>
    %28 = vector.multi_reduction <add>, %27, %cst_15 [1] : vector<8x128xf32> to vector<8xf32>
    %29 = vector.shape_cast %28 : vector<8xf32> to vector<8x1xf32>
    %cst_16 = arith.constant 3.125000e-02 : f32
    %30 = vector.broadcast %cst_16 : f32 to vector<8x1xf32>
    %31 = arith.mulf %29, %30 : vector<8x1xf32>
    %32 = arith.mulf %26, %26 : vector<8x1xf32>
    %33 = arith.subf %31, %32 : vector<8x1xf32>
    %cst_17 = arith.constant 0.000000e+00 : f32
    %34 = vector.broadcast %cst_17 : f32 to vector<8x1xf32>
    %35 = arith.maximumf %33, %34 : vector<8x1xf32>
    %36 = vector.broadcast %26 : vector<8x1xf32> to vector<8x128xf32>
    %37 = arith.subf %22, %36 : vector<8x128xf32>
    %cst_18 = arith.constant 9.99999974E-6 : f32
    %38 = vector.broadcast %cst_18 : f32 to vector<8x1xf32>
    %39 = arith.addf %35, %38 : vector<8x1xf32>
    %40 = math.rsqrt %39 : vector<8x1xf32>
    %41 = vector.broadcast %40 : vector<8x1xf32> to vector<8x128xf32>
    %42 = arith.mulf %37, %41 : vector<8x128xf32>
    %43 = vector.broadcast %20 : vector<1x128xf32> to vector<8x128xf32>
    %44 = arith.mulf %42, %43 : vector<8x128xf32>
    %45 = vector.broadcast %21 : vector<1x128xf32> to vector<8x128xf32>
    %46 = arith.addf %44, %45 : vector<8x128xf32>
    %c0_19 = arith.constant 0 : index
    %c0_20 = arith.constant 0 : index
    %47 = vector.load %arg5[%c0_19, %c0_20] : memref<128x128xbf16, #tpu.memory_space<vmem>>, vector<128x128xbf16>
    %c5 = arith.constant 5 : index
    %c0_21 = arith.constant 0 : index
    %48 = vector.load %arg2[%c5, %c0_21] : memref<16x128xf32, #tpu.memory_space<vmem>>, vector<1x128xf32>
    %c0_22 = arith.constant 0 : index
    %c0_23 = arith.constant 0 : index
    %49 = vector.load %arg6[%c0_22, %c0_23] : memref<128x128xbf16, #tpu.memory_space<vmem>>, vector<128x128xbf16>
    %c6 = arith.constant 6 : index
    %c0_24 = arith.constant 0 : index
    %50 = vector.load %arg2[%c6, %c0_24] : memref<16x128xf32, #tpu.memory_space<vmem>>, vector<1x128xf32>
    %c7 = arith.constant 7 : index
    %c0_25 = arith.constant 0 : index
    %51 = vector.load %arg2[%c7, %c0_25] : memref<16x128xf32, #tpu.memory_space<vmem>>, vector<1x128xf32>
    %c8 = arith.constant 8 : index
    %c0_26 = arith.constant 0 : index
    %52 = vector.load %arg2[%c8, %c0_26] : memref<16x128xf32, #tpu.memory_space<vmem>>, vector<1x128xf32>
    %53 = arith.truncf %46 : vector<8x128xf32> to vector<8x128xbf16>
    %cst_27 = arith.constant dense<0.000000e+00> : vector<8x128xf32>
    %54 = tpu.matmul %53, %47, %cst_27 {dimension_numbers = #tpu.dot_dimension_numbers<[1], [0], [0], [1], [0, 0, 1, 1], [], []>} : vector<8x128xbf16>, vector<128x128xbf16>, vector<8x128xf32> -> vector<8x128xf32>
    %55 = vector.broadcast %48 : vector<1x128xf32> to vector<8x128xf32>
    %56 = arith.addf %54, %55 : vector<8x128xf32>
    %cst_28 = arith.constant 0.000000e+00 : f32
    %57 = vector.broadcast %cst_28 : f32 to vector<8x128xf32>
    %58 = arith.maximumf %56, %57 : vector<8x128xf32>
    %59 = arith.truncf %58 : vector<8x128xf32> to vector<8x128xbf16>
    %cst_29 = arith.constant dense<0.000000e+00> : vector<8x128xf32>
    %60 = tpu.matmul %59, %49, %cst_29 {dimension_numbers = #tpu.dot_dimension_numbers<[1], [0], [0], [1], [0, 0, 1, 1], [], []>} : vector<8x128xbf16>, vector<128x128xbf16>, vector<8x128xf32> -> vector<8x128xf32>
    %61 = vector.broadcast %50 : vector<1x128xf32> to vector<8x128xf32>
    %62 = arith.addf %60, %61 : vector<8x128xf32>
    %63 = arith.addf %46, %62 : vector<8x128xf32>
    %cst_30 = arith.constant dense<0.000000e+00> : vector<8xf32>
    %64 = vector.multi_reduction <add>, %63, %cst_30 [1] : vector<8x128xf32> to vector<8xf32>
    %65 = vector.shape_cast %64 : vector<8xf32> to vector<8x1xf32>
    %cst_31 = arith.constant 3.125000e-02 : f32
    %66 = vector.broadcast %cst_31 : f32 to vector<8x1xf32>
    %67 = arith.mulf %65, %66 : vector<8x1xf32>
    %68 = arith.mulf %63, %63 : vector<8x128xf32>
    %cst_32 = arith.constant dense<0.000000e+00> : vector<8xf32>
    %69 = vector.multi_reduction <add>, %68, %cst_32 [1] : vector<8x128xf32> to vector<8xf32>
    %70 = vector.shape_cast %69 : vector<8xf32> to vector<8x1xf32>
    %cst_33 = arith.constant 3.125000e-02 : f32
    %71 = vector.broadcast %cst_33 : f32 to vector<8x1xf32>
    %72 = arith.mulf %70, %71 : vector<8x1xf32>
    %73 = arith.mulf %67, %67 : vector<8x1xf32>
    %74 = arith.subf %72, %73 : vector<8x1xf32>
    %cst_34 = arith.constant 0.000000e+00 : f32
    %75 = vector.broadcast %cst_34 : f32 to vector<8x1xf32>
    %76 = arith.maximumf %74, %75 : vector<8x1xf32>
    %77 = vector.broadcast %67 : vector<8x1xf32> to vector<8x128xf32>
    %78 = arith.subf %63, %77 : vector<8x128xf32>
    %cst_35 = arith.constant 9.99999974E-6 : f32
    %79 = vector.broadcast %cst_35 : f32 to vector<8x1xf32>
    %80 = arith.addf %76, %79 : vector<8x1xf32>
    %81 = math.rsqrt %80 : vector<8x1xf32>
    %82 = vector.broadcast %81 : vector<8x1xf32> to vector<8x128xf32>
    %83 = arith.mulf %78, %82 : vector<8x128xf32>
    %84 = vector.broadcast %51 : vector<1x128xf32> to vector<8x128xf32>
    %85 = arith.mulf %83, %84 : vector<8x128xf32>
    %86 = vector.broadcast %52 : vector<1x128xf32> to vector<8x128xf32>
    %87 = arith.addf %85, %86 : vector<8x128xf32>
    %c0_36 = arith.constant 0 : index
    %c0_37 = arith.constant 0 : index
    %88 = vector.load %arg7[%c0_36, %c0_37] : memref<128x128xbf16, #tpu.memory_space<vmem>>, vector<128x128xbf16>
    %c9 = arith.constant 9 : index
    %c0_38 = arith.constant 0 : index
    %89 = vector.load %arg2[%c9, %c0_38] : memref<16x128xf32, #tpu.memory_space<vmem>>, vector<1x128xf32>
    %c0_39 = arith.constant 0 : index
    %c0_40 = arith.constant 0 : index
    %90 = vector.load %arg8[%c0_39, %c0_40] : memref<128x128xbf16, #tpu.memory_space<vmem>>, vector<128x128xbf16>
    %c10 = arith.constant 10 : index
    %c0_41 = arith.constant 0 : index
    %91 = vector.load %arg2[%c10, %c0_41] : memref<16x128xf32, #tpu.memory_space<vmem>>, vector<1x128xf32>
    %c11 = arith.constant 11 : index
    %c0_42 = arith.constant 0 : index
    %92 = vector.load %arg2[%c11, %c0_42] : memref<16x128xf32, #tpu.memory_space<vmem>>, vector<1x128xf32>
    %c12 = arith.constant 12 : index
    %c0_43 = arith.constant 0 : index
    %93 = vector.load %arg2[%c12, %c0_43] : memref<16x128xf32, #tpu.memory_space<vmem>>, vector<1x128xf32>
    %94 = arith.truncf %87 : vector<8x128xf32> to vector<8x128xbf16>
    %cst_44 = arith.constant dense<0.000000e+00> : vector<8x128xf32>
    %95 = tpu.matmul %94, %88, %cst_44 {dimension_numbers = #tpu.dot_dimension_numbers<[1], [0], [0], [1], [0, 0, 1, 1], [], []>} : vector<8x128xbf16>, vector<128x128xbf16>, vector<8x128xf32> -> vector<8x128xf32>
    %96 = vector.broadcast %89 : vector<1x128xf32> to vector<8x128xf32>
    %97 = arith.addf %95, %96 : vector<8x128xf32>
    %cst_45 = arith.constant 0.000000e+00 : f32
    %98 = vector.broadcast %cst_45 : f32 to vector<8x128xf32>
    %99 = arith.maximumf %97, %98 : vector<8x128xf32>
    %100 = arith.truncf %99 : vector<8x128xf32> to vector<8x128xbf16>
    %cst_46 = arith.constant dense<0.000000e+00> : vector<8x128xf32>
    %101 = tpu.matmul %100, %90, %cst_46 {dimension_numbers = #tpu.dot_dimension_numbers<[1], [0], [0], [1], [0, 0, 1, 1], [], []>} : vector<8x128xbf16>, vector<128x128xbf16>, vector<8x128xf32> -> vector<8x128xf32>
    %102 = vector.broadcast %91 : vector<1x128xf32> to vector<8x128xf32>
    %103 = arith.addf %101, %102 : vector<8x128xf32>
    %104 = arith.addf %87, %103 : vector<8x128xf32>
    %cst_47 = arith.constant dense<0.000000e+00> : vector<8xf32>
    %105 = vector.multi_reduction <add>, %104, %cst_47 [1] : vector<8x128xf32> to vector<8xf32>
    %106 = vector.shape_cast %105 : vector<8xf32> to vector<8x1xf32>
    %cst_48 = arith.constant 3.125000e-02 : f32
    %107 = vector.broadcast %cst_48 : f32 to vector<8x1xf32>
    %108 = arith.mulf %106, %107 : vector<8x1xf32>
    %109 = arith.mulf %104, %104 : vector<8x128xf32>
    %cst_49 = arith.constant dense<0.000000e+00> : vector<8xf32>
    %110 = vector.multi_reduction <add>, %109, %cst_49 [1] : vector<8x128xf32> to vector<8xf32>
    %111 = vector.shape_cast %110 : vector<8xf32> to vector<8x1xf32>
    %cst_50 = arith.constant 3.125000e-02 : f32
    %112 = vector.broadcast %cst_50 : f32 to vector<8x1xf32>
    %113 = arith.mulf %111, %112 : vector<8x1xf32>
    %114 = arith.mulf %108, %108 : vector<8x1xf32>
    %115 = arith.subf %113, %114 : vector<8x1xf32>
    %cst_51 = arith.constant 0.000000e+00 : f32
    %116 = vector.broadcast %cst_51 : f32 to vector<8x1xf32>
    %117 = arith.maximumf %115, %116 : vector<8x1xf32>
    %118 = vector.broadcast %108 : vector<8x1xf32> to vector<8x128xf32>
    %119 = arith.subf %104, %118 : vector<8x128xf32>
    %cst_52 = arith.constant 9.99999974E-6 : f32
    %120 = vector.broadcast %cst_52 : f32 to vector<8x1xf32>
    %121 = arith.addf %117, %120 : vector<8x1xf32>
    %122 = math.rsqrt %121 : vector<8x1xf32>
    %123 = vector.broadcast %122 : vector<8x1xf32> to vector<8x128xf32>
    %124 = arith.mulf %119, %123 : vector<8x128xf32>
    %125 = vector.broadcast %92 : vector<1x128xf32> to vector<8x128xf32>
    %126 = arith.mulf %124, %125 : vector<8x128xf32>
    %127 = vector.broadcast %93 : vector<1x128xf32> to vector<8x128xf32>
    %128 = arith.addf %126, %127 : vector<8x128xf32>
    %c0_53 = arith.constant 0 : index
    %c0_54 = arith.constant 0 : index
    %129 = vector.load %arg9[%c0_53, %c0_54] : memref<128x128xbf16, #tpu.memory_space<vmem>>, vector<128x128xbf16>
    %c13 = arith.constant 13 : index
    %c0_55 = arith.constant 0 : index
    %130 = vector.load %arg2[%c13, %c0_55] : memref<16x128xf32, #tpu.memory_space<vmem>>, vector<1x128xf32>
    %131 = arith.truncf %128 : vector<8x128xf32> to vector<8x128xbf16>
    %cst_56 = arith.constant dense<0.000000e+00> : vector<8x128xf32>
    %132 = tpu.matmul %131, %129, %cst_56 {dimension_numbers = #tpu.dot_dimension_numbers<[1], [0], [0], [1], [0, 0, 1, 1], [], []>} : vector<8x128xbf16>, vector<128x128xbf16>, vector<8x128xf32> -> vector<8x128xf32>
    %133 = vector.broadcast %130 : vector<1x128xf32> to vector<8x128xf32>
    %134 = arith.addf %132, %133 : vector<8x128xf32>
    %c0_57 = arith.constant 0 : index
    %c0_58 = arith.constant 0 : index
    %135 = vector.load %arg10[%c0_57, %c0_58] : memref<8x128xf32, #tpu.memory_space<vmem>>, vector<8x128xf32>
    tpu.vector_store %arg10[%c0_57, %c0_58], %134 {strides = array<i32>} : memref<8x128xf32, #tpu.memory_space<vmem>>, vector<8x128xf32>,
    return
  }
  func.func @transform_0(%arg0: i32) -> (i32, i32) {
    %c0_i32 = arith.constant 0 : i32
    %c0_i32_0 = arith.constant 0 : i32
    return %arg0, %c0_i32 : i32, i32
  }
  func.func @transform_1(%arg0: i32) -> (i32, i32) {
    %c0_i32 = arith.constant 0 : i32
    %c0_i32_0 = arith.constant 0 : i32
    %c0_i32_1 = arith.constant 0 : i32
    return %c0_i32, %c0_i32_0 : i32, i32
  }
  func.func @transform_2(%arg0: i32) -> (i32, i32) {
    %c0_i32 = arith.constant 0 : i32
    %c0_i32_0 = arith.constant 0 : i32
    %c0_i32_1 = arith.constant 0 : i32
    return %c0_i32, %c0_i32_0 : i32, i32
  }
  func.func @transform_3(%arg0: i32) -> (i32, i32) {
    %c0_i32 = arith.constant 0 : i32
    %c0_i32_0 = arith.constant 0 : i32
    %c0_i32_1 = arith.constant 0 : i32
    return %c0_i32, %c0_i32_0 : i32, i32
  }
  func.func @transform_4(%arg0: i32) -> (i32, i32) {
    %c0_i32 = arith.constant 0 : i32
    %c0_i32_0 = arith.constant 0 : i32
    %c0_i32_1 = arith.constant 0 : i32
    return %c0_i32, %c0_i32_0 : i32, i32
  }
  func.func @transform_5(%arg0: i32) -> (i32, i32) {
    %c0_i32 = arith.constant 0 : i32
    %c0_i32_0 = arith.constant 0 : i32
    %c0_i32_1 = arith.constant 0 : i32
    return %c0_i32, %c0_i32_0 : i32, i32
  }
  func.func @transform_6(%arg0: i32) -> (i32, i32) {
    %c0_i32 = arith.constant 0 : i32
    %c0_i32_0 = arith.constant 0 : i32
    %c0_i32_1 = arith.constant 0 : i32
    return %c0_i32, %c0_i32_0 : i32, i32
  }
  func.func @transform_7(%arg0: i32) -> (i32, i32) {
    %c0_i32 = arith.constant 0 : i32
    %c0_i32_0 = arith.constant 0 : i32
    %c0_i32_1 = arith.constant 0 : i32
    return %c0_i32, %c0_i32_0 : i32, i32
  }
  func.func @transform_8(%arg0: i32) -> (i32, i32) {
    %c0_i32 = arith.constant 0 : i32
    %c0_i32_0 = arith.constant 0 : i32
    %c0_i32_1 = arith.constant 0 : i32
    return %c0_i32, %c0_i32_0 : i32, i32
  }
  func.func @transform_9(%arg0: i32) -> (i32, i32) {
    %c0_i32 = arith.constant 0 : i32
    %c0_i32_0 = arith.constant 0 : i32
    return %arg0, %c0_i32 : i32, i32
  }
}

</mosaic_0001>

<llo_original>
// kernel: tpu_custom_call.1
$region0: #{tpu_custom_call.1}
  #allocation0 [shape = 'u32[]', space=smem, size = 0x4, offset = 0x4, fixed_abs, tag = 'smem constant byte address 0x4 - core index']
  #allocation1 [shape = 'u32[144,128]{1,0:T(1,128)}', space=vmem, size = 0x12000, scoped, tag = 'internal scratch']
  %s0 = inlined_call_operand.hbm [shape: f32[8,128], index: 0, kind: input, shape index: {}]
  %s1 = inlined_call_operand.hbm [shape: f32[16,128], index: 1, kind: input, shape index: {}]
  %s2 = inlined_call_operand.hbm [shape: bf16[128,256], index: 2, kind: input, shape index: {}]
  %s3 = inlined_call_operand.hbm [shape: bf16[128,128], index: 3, kind: input, shape index: {}]
  %s4 = inlined_call_operand.hbm [shape: bf16[128,128], index: 4, kind: input, shape index: {}]
  %s5 = inlined_call_operand.hbm [shape: bf16[128,128], index: 5, kind: input, shape index: {}]
  %s6 = inlined_call_operand.hbm [shape: bf16[128,128], index: 6, kind: input, shape index: {}]
  %s7 = inlined_call_operand.hbm [shape: bf16[128,128], index: 7, kind: input, shape index: {}]
  %s8 = inlined_call_operand.hbm [shape: bf16[128,128], index: 8, kind: input, shape index: {}]
  %s9 = inlined_call_operand.hbm [shape: f32[8,128], index: 9, kind: output, shape index: {}]
  %s10 = sld [smem:[#allocation0]]
  $region82: #{tpu_custom_call.1} parent=0
    _
  %s12 = ssub.s32 1, %s10
  %s13 = scalar_select 0, %s12, %s10
  $region1: #{tpu_custom_call.1} parent=0
    #allocation2 [shape = 'u8[4096]{0}', space=vmem, size = 0x1000, scoped, tag = 'input window, operand 0, single buffered']
    #allocation3 [shape = 's32[1]{0}', space=sflag, size = 0x4, scoped, tag = 'scoped memory for tpu_custom_call.1']
    #allocation4 [shape = 's32[1]{0}', space=sflag, size = 0x4, scoped, tag = 'scoped memory for tpu_custom_call.1']
    #allocation5 [shape = 'u8[8192]{0}', space=vmem, size = 0x2000, scoped, tag = 'input window, operand 1, single buffered']
    #allocation6 [shape = 's32[1]{0}', space=sflag, size = 0x4, scoped, tag = 'scoped memory for tpu_custom_call.1']
    #allocation7 [shape = 'u8[65536]{0}', space=vmem, size = 0x10000, scoped, tag = 'input window, operand 2, single buffered']
    #allocation8 [shape = 'u8[32768]{0}', space=vmem, size = 0x8000, scoped, tag = 'input window, operand 3, single buffered']
    #allocation9 [shape = 's32[1]{0}', space=sflag, size = 0x4, scoped, tag = 'scoped memory for tpu_custom_call.1']
    #allocation10 [shape = 'u8[32768]{0}', space=vmem, size = 0x8000, scoped, tag = 'input window, operand 4, single buffered']
    #allocation11 [shape = 'u8[32768]{0}', space=vmem, size = 0x8000, scoped, tag = 'input window, operand 5, single buffered']
    #allocation12 [shape = 's32[1]{0}', space=sflag, size = 0x4, scoped, tag = 'scoped memory for tpu_custom_call.1']
    #allocation13 [shape = 'u8[32768]{0}', space=vmem, size = 0x8000, scoped, tag = 'input window, operand 6, single buffered']
    #allocation14 [shape = 'u8[32768]{0}', space=vmem, size = 0x8000, scoped, tag = 'input window, operand 7, single buffered']
    #allocation15 [shape = 's32[1]{0}', space=sflag, size = 0x4, scoped, tag = 'scoped memory for tpu_custom_call.1']
    #allocation16 [shape = 'u8[32768]{0}', space=vmem, size = 0x8000, scoped, tag = 'input window, operand 8, single buffered']
    #allocation17 [shape = 'u8[4096]{0}', space=vmem, size = 0x1000, scoped, tag = 'output window, operand 0, single buffered']
    %14 = vsyncpa [#allocation3], 0
    %15 = vsyncpa [#allocation6], 0
    %16 = vsyncpa [#allocation9], 0
    %17 = vsyncpa [#allocation12], 0
    %18 = vsyncpa [#allocation15], 0
    %19 = vsyncpa [#allocation4], 0
    // Predicated region
    $region2: #{tpu_custom_call.1} parent=1 // pred_check
      _
    $region3: #{tpu_custom_call.1} parent=1 // pred_check_branch
      %21 = sbr.rel (0) target = $region5
    $region4: #{tpu_custom_call.1} parent=1 // pred_region
      %s23 = ssub.s32 128, 128
      %24 = vsyncadd [#allocation3], %s23
      %s26 = sshll.u32 [#allocation2], 4
      %s27 = int_to_ptr.vmem [resolvable:$true] %s26
      %29 = dma.hbm_to_vmem [thread:$0]  %s0, 128, %s27, [#allocation3]
    $region5: #{tpu_custom_call.1} parent=1 // pred_fallthru
      _
    // Predicated region
    $region6: #{tpu_custom_call.1} parent=1 // pred_check
      _
    $region7: #{tpu_custom_call.1} parent=1 // pred_check_branch
      %31 = sbr.rel (0) target = $region9
    $region8: #{tpu_custom_call.1} parent=1 // pred_region
      %s33 = ssub.s32 256, 256
      %34 = vsyncadd [#allocation6], %s33
      %s35 = sshll.u32 [#allocation5], 4
      %s36 = int_to_ptr.vmem [resolvable:$true] %s35
      %41 = dma.hbm_to_vmem [thread:$0]  %s1, 256, %s36, [#allocation6], 128, 128, 8
    $region9: #{tpu_custom_call.1} parent=1 // pred_fallthru
      _
    // Predicated region
    $region10: #{tpu_custom_call.1} parent=1 // pred_check
      _
    $region11: #{tpu_custom_call.1} parent=1 // pred_check_branch
      %43 = sbr.rel (0) target = $region13
    $region12: #{tpu_custom_call.1} parent=1 // pred_region
      %s45 = ssub.s32 2048, 2048
      %46 = vsyncadd [#allocation6], %s45
      %s47 = sshll.u32 [#allocation7], 4
      %s48 = int_to_ptr.vmem [resolvable:$true] %s47
      %53 = dma.hbm_to_vmem [thread:$0]  %s2, 2048, %s48, [#allocation6], 128, 128, 8
    $region13: #{tpu_custom_call.1} parent=1 // pred_fallthru
      _
    // Predicated region
    $region14: #{tpu_custom_call.1} parent=1 // pred_check
      _
    $region15: #{tpu_custom_call.1} parent=1 // pred_check_branch
      %55 = sbr.rel (0) target = $region17
    $region16: #{tpu_custom_call.1} parent=1 // pred_region
      %s57 = ssub.s32 1024, 1024
      %58 = vsyncadd [#allocation9], %s57
      %s59 = sshll.u32 [#allocation8], 4
      %s60 = int_to_ptr.vmem [resolvable:$true] %s59
      %65 = dma.hbm_to_vmem [thread:$0]  %s3, 1024, %s60, [#allocation9], 64, 64, 4
    $region17: #{tpu_custom_call.1} parent=1 // pred_fallthru
      _
    // Predicated region
    $region18: #{tpu_custom_call.1} parent=1 // pred_check
      _
    $region19: #{tpu_custom_call.1} parent=1 // pred_check_branch
      %67 = sbr.rel (0) target = $region21
    $region20: #{tpu_custom_call.1} parent=1 // pred_region
      %s69 = ssub.s32 1024, 1024
      %70 = vsyncadd [#allocation9], %s69
      %s71 = sshll.u32 [#allocation10], 4
      %s72 = int_to_ptr.vmem [resolvable:$true] %s71
      %77 = dma.hbm_to_vmem [thread:$0]  %s4, 1024, %s72, [#allocation9], 64, 64, 4
    $region21: #{tpu_custom_call.1} parent=1 // pred_fallthru
      _
    // Predicated region
    $region22: #{tpu_custom_call.1} parent=1 // pred_check
      _
    $region23: #{tpu_custom_call.1} parent=1 // pred_check_branch
      %79 = sbr.rel (0) target = $region25
    $region24: #{tpu_custom_call.1} parent=1 // pred_region
      %s81 = ssub.s32 1024, 1024
      %82 = vsyncadd [#allocation12], %s81
      %s83 = sshll.u32 [#allocation11], 4
      %s84 = int_to_ptr.vmem [resolvable:$true] %s83
      %89 = dma.hbm_to_vmem [thread:$0]  %s5, 1024, %s84, [#allocation12], 64, 64, 4
    $region25: #{tpu_custom_call.1} parent=1 // pred_fallthru
      _
    // Predicated region
    $region26: #{tpu_custom_call.1} parent=1 // pred_check
      _
    $region27: #{tpu_custom_call.1} parent=1 // pred_check_branch
      %91 = sbr.rel (0) target = $region29
    $region28: #{tpu_custom_call.1} parent=1 // pred_region
      %s93 = ssub.s32 1024, 1024
      %94 = vsyncadd [#allocation12], %s93
      %s95 = sshll.u32 [#allocation13], 4
      %s96 = int_to_ptr.vmem [resolvable:$true] %s95
      %101 = dma.hbm_to_vmem [thread:$0]  %s6, 1024, %s96, [#allocation12], 64, 64, 4
    $region29: #{tpu_custom_call.1} parent=1 // pred_fallthru
      _
    // Predicated region
    $region30: #{tpu_custom_call.1} parent=1 // pred_check
      _
    $region31: #{tpu_custom_call.1} parent=1 // pred_check_branch
      %103 = sbr.rel (0) target = $region33
    $region32: #{tpu_custom_call.1} parent=1 // pred_region
      %s105 = ssub.s32 1024, 1024
      %106 = vsyncadd [#allocation15], %s105
      %s107 = sshll.u32 [#allocation14], 4
      %s108 = int_to_ptr.vmem [resolvable:$true] %s107
      %113 = dma.hbm_to_vmem [thread:$0]  %s7, 1024, %s108, [#allocation15], 64, 64, 4
    $region33: #{tpu_custom_call.1} parent=1 // pred_fallthru
      _
    // Predicated region
    $region34: #{tpu_custom_call.1} parent=1 // pred_check
      _
    $region35: #{tpu_custom_call.1} parent=1 // pred_check_branch
      %115 = sbr.rel (0) target = $region37
    $region36: #{tpu_custom_call.1} parent=1 // pred_region
      %s117 = ssub.s32 1024, 1024
      %118 = vsyncadd [#allocation15], %s117
      %s119 = sshll.u32 [#allocation16], 4
      %s120 = int_to_ptr.vmem [resolvable:$true] %s119
      %125 = dma.hbm_to_vmem [thread:$0]  %s8, 1024, %s120, [#allocation15], 64, 64, 4
    $region37: #{tpu_custom_call.1} parent=1 // pred_fallthru
      _
    // Predicated region
    $region38: #{tpu_custom_call.1} parent=1 // pred_check
      _
    $region39: #{tpu_custom_call.1} parent=1 // pred_check_branch
      %127 = sbr.rel (0) target = $region41
    $region40: #{tpu_custom_call.1} parent=1 // pred_region
      %128 = dma.done [#allocation3], 128
    $region41: #{tpu_custom_call.1} parent=1 // pred_fallthru
      _
    // Predicated region
    $region42: #{tpu_custom_call.1} parent=1 // pred_check
      _
    $region43: #{tpu_custom_call.1} parent=1 // pred_check_branch
      %130 = sbr.rel (0) target = $region45
    $region44: #{tpu_custom_call.1} parent=1 // pred_region
      %131 = dma.done [#allocation6], 256
    $region45: #{tpu_custom_call.1} parent=1 // pred_fallthru
      _
    // Predicated region
    $region46: #{tpu_custom_call.1} parent=1 // pred_check
      _
    $region47: #{tpu_custom_call.1} parent=1 // pred_check_branch
      %133 = sbr.rel (0) target = $region49
    $region48: #{tpu_custom_call.1} parent=1 // pred_region
      %134 = dma.done [#allocation6], 2048
    $region49: #{tpu_custom_call.1} parent=1 // pred_fallthru
      _
    // Predicated region
    $region50: #{tpu_custom_call.1} parent=1 // pred_check
      _
    $region51: #{tpu_custom_call.1} parent=1 // pred_check_branch
      %136 = sbr.rel (0) target = $region53
    $region52: #{tpu_custom_call.1} parent=1 // pred_region
      %137 = dma.done [#allocation9], 1024
    $region53: #{tpu_custom_call.1} parent=1 // pred_fallthru
      _
    // Predicated region
    $region54: #{tpu_custom_call.1} parent=1 // pred_check
      _
    $region55: #{tpu_custom_call.1} parent=1 // pred_check_branch
      %139 = sbr.rel (0) target = $region57
    $region56: #{tpu_custom_call.1} parent=1 // pred_region
      %140 = dma.done [#allocation9], 1024
    $region57: #{tpu_custom_call.1} parent=1 // pred_fallthru
      _
    // Predicated region
    $region58: #{tpu_custom_call.1} parent=1 // pred_check
      _
    $region59: #{tpu_custom_call.1} parent=1 // pred_check_branch
      %142 = sbr.rel (0) target = $region61
    $region60: #{tpu_custom_call.1} parent=1 // pred_region
      %143 = dma.done [#allocation12], 1024
    $region61: #{tpu_custom_call.1} parent=1 // pred_fallthru
      _
    // Predicated region
    $region62: #{tpu_custom_call.1} parent=1 // pred_check
      _
    $region63: #{tpu_custom_call.1} parent=1 // pred_check_branch
      %145 = sbr.rel (0) target = $region65
    $region64: #{tpu_custom_call.1} parent=1 // pred_region
      %146 = dma.done [#allocation12], 1024
    $region65: #{tpu_custom_call.1} parent=1 // pred_fallthru
      _
    // Predicated region
    $region66: #{tpu_custom_call.1} parent=1 // pred_check
      _
    $region67: #{tpu_custom_call.1} parent=1 // pred_check_branch
      %148 = sbr.rel (0) target = $region69
    $region68: #{tpu_custom_call.1} parent=1 // pred_region
      %149 = dma.done [#allocation15], 1024
    $region69: #{tpu_custom_call.1} parent=1 // pred_fallthru
      _
    // Predicated region
    $region70: #{tpu_custom_call.1} parent=1 // pred_check
      _
    $region71: #{tpu_custom_call.1} parent=1 // pred_check_branch
      %151 = sbr.rel (0) target = $region73
    $region72: #{tpu_custom_call.1} parent=1 // pred_region
      %152 = dma.done [#allocation15], 1024
    $region73: #{tpu_custom_call.1} parent=1 // pred_fallthru
      _
    %v154 = vld [vmem:[#allocation2] sm:$0xff]
    %v155 = vpack.c.bf16 %v154, %v154
    %v156 = vld [vmem:[#allocation7] sm:$0xff]
    %v157 = vld [vmem:[#allocation7 + $0x8] sm:$0xff]
    %v158 = vld [vmem:[#allocation7 + $0x10] sm:$0xff]
    %v159 = vld [vmem:[#allocation7 + $0x18] sm:$0xff]
    %v160 = vld [vmem:[#allocation7 + $0x20] sm:$0xff]
    %v161 = vld [vmem:[#allocation7 + $0x28] sm:$0xff]
    %v162 = vld [vmem:[#allocation7 + $0x30] sm:$0xff]
    %v163 = vld [vmem:[#allocation7 + $0x38] sm:$0xff]
    %v164 = vld [vmem:[#allocation7 + $0x40] sm:$0xff]
    %v165 = vld [vmem:[#allocation7 + $0x48] sm:$0xff]
    %v166 = vld [vmem:[#allocation7 + $0x50] sm:$0xff]
    %v167 = vld [vmem:[#allocation7 + $0x58] sm:$0xff]
    %v168 = vld [vmem:[#allocation7 + $0x60] sm:$0xff]
    %v169 = vld [vmem:[#allocation7 + $0x68] sm:$0xff]
    %v170 = vld [vmem:[#allocation7 + $0x70] sm:$0xff]
    %v171 = vld [vmem:[#allocation7 + $0x78] sm:$0xff]
    %v188 = vunpack.c.l.b16 %v156
    %v189 = vunpack.c.h.b16 %v156
    %v190 = vunpack.c.l.b16 %v157
    %v191 = vunpack.c.h.b16 %v157
    %v192 = vunpack.c.l.b16 %v158
    %v193 = vunpack.c.h.b16 %v158
    %v194 = vunpack.c.l.b16 %v159
    %v195 = vunpack.c.h.b16 %v159
    %v196 = vunpack.c.l.b16 %v160
    %v197 = vunpack.c.h.b16 %v160
    %v198 = vunpack.c.l.b16 %v161
    %v199 = vunpack.c.h.b16 %v161
    %v200 = vunpack.c.l.b16 %v162
    %v201 = vunpack.c.h.b16 %v162
    %v202 = vunpack.c.l.b16 %v163
    %v203 = vunpack.c.h.b16 %v163
    %v204 = vunpack.c.l.b16 %v164
    %v205 = vunpack.c.h.b16 %v164
    %v206 = vunpack.c.l.b16 %v165
    %v207 = vunpack.c.h.b16 %v165
    %v208 = vunpack.c.l.b16 %v166
    %v209 = vunpack.c.h.b16 %v166
    %v210 = vunpack.c.l.b16 %v167
    %v211 = vunpack.c.h.b16 %v167
    %v212 = vunpack.c.l.b16 %v168
    %v213 = vunpack.c.h.b16 %v168
    %v214 = vunpack.c.l.b16 %v169
    %v215 = vunpack.c.h.b16 %v169
    %v216 = vunpack.c.l.b16 %v170
    %v217 = vunpack.c.h.b16 %v170
    %v218 = vunpack.c.l.b16 %v171
    %v219 = vunpack.c.h.b16 %v171
    %v220 = vpack.c.b16 %v190, %v188
    %v221 = vpack.c.b16 %v191, %v189
    %v222 = vpack.c.b16 %v194, %v192
    %v223 = vpack.c.b16 %v195, %v193
    %v224 = vpack.c.b16 %v198, %v196
    %v225 = vpack.c.b16 %v199, %v197
    %v226 = vpack.c.b16 %v202, %v200
    %v227 = vpack.c.b16 %v203, %v201
    %v228 = vpack.c.b16 %v206, %v204
    %v229 = vpack.c.b16 %v207, %v205
    %v230 = vpack.c.b16 %v210, %v208
    %v231 = vpack.c.b16 %v211, %v209
    %v232 = vpack.c.b16 %v214, %v212
    %v233 = vpack.c.b16 %v215, %v213
    %v234 = vpack.c.b16 %v218, %v216
    %v235 = vpack.c.b16 %v219, %v217
    %252 = vmatprep.subr.bf16.mxu0 %v221
    %253 = vmatpush1.bf16.msra.mxu0 %v220
    %254 = vmatprep.subr.bf16.mxu0 %v223
    %255 = vmatpush1.bf16.msra.mxu0 %v222
    %256 = vmatprep.subr.bf16.mxu0 %v225
    %257 = vmatpush1.bf16.msra.mxu0 %v224
    %258 = vmatprep.subr.bf16.mxu0 %v227
    %259 = vmatpush1.bf16.msra.mxu0 %v226
    %260 = vmatprep.subr.bf16.mxu0 %v229
    %261 = vmatpush1.bf16.msra.mxu0 %v228
    %262 = vmatprep.subr.bf16.mxu0 %v231
    %263 = vmatpush1.bf16.msra.mxu0 %v230
    %264 = vmatprep.subr.bf16.mxu0 %v233
    %265 = vmatpush1.bf16.msra.mxu0 %v232
    %266 = vmatprep.subr.bf16.mxu0 %v235
    %267 = vmatpush1.bf16.msra.mxu0 %v234
    %268 = vmatprep.subr.bf16.mxu0 0
    %269 = vmatpush1.bf16.msra.mxu0 0
    %270 = vmatprep.subr.bf16.mxu0 0
    %271 = vmatpush1.bf16.msra.mxu0 0
    %272 = vmatprep.subr.bf16.mxu0 0
    %273 = vmatpush1.bf16.msra.mxu0 0
    %274 = vmatprep.subr.bf16.mxu0 0
    %275 = vmatpush1.bf16.msra.mxu0 0
    %276 = vmatprep.subr.bf16.mxu0 0
    %277 = vmatpush1.bf16.msra.mxu0 0
    %278 = vmatprep.subr.bf16.mxu0 0
    %279 = vmatpush1.bf16.msra.mxu0 0
    %280 = vmatprep.subr.bf16.mxu0 0
    %281 = vmatpush1.bf16.msra.mxu0 0
    %282 = vmatprep.subr.bf16.mxu0 0
    %283 = vmatpush1.bf16.msra.mxu0 0
    %284 = vmatprep.mubr.bf16.mxu0 0
    %285 = vmatmul.mubr.bf16.gmra.mrb[0].mxu0 %v155
    %v286 = vpop.f32.mrb[0].mxu0
    %v287 = vadd.f32 0.0, %v286
    %v288 = vpop.f32.mrb[0].mxu0
    %v289 = vadd.f32 0.0, %v288
    %v290 = vpop.f32.mrb[0].mxu0
    %v291 = vpop.f32.mrb[0].mxu0
    %292 = vdwg.mxu0
    %v293 = vld [vmem:[#allocation5] sm:$0x1]
    %v294 = vld [vmem:[#allocation5 + $0x1] sm:$0x1]
    %v295 = vlaneseq
    %v296 = vshrl.u32 %v295, 7
    %v297 = vsub.s32 0, %v296
    %v298 = vrot.slane %v293, %v297
    %v299 = vadd.f32 %v287, %v298
    %v300 = vlaneseq
    %v301 = vshrl.u32 %v300, 7
    %v302 = vsub.s32 0, %v301
    %v303 = vrot.slane %v294, %v302
    %v304 = vadd.f32 %v289, %v303
    %v305 = vmax.f32 %v304, 0.0
    %v306 = vld [vmem:[#allocation8] sm:$0xf]
    %v307 = vld [vmem:[#allocation8 + $0x4] sm:$0xf]
    %v308 = vld [vmem:[#allocation8 + $0x8] sm:$0xf]
    %v309 = vld [vmem:[#allocation8 + $0xc] sm:$0xf]
    %v310 = vld [vmem:[#allocation8 + $0x10] sm:$0xf]
    %v311 = vld [vmem:[#allocation8 + $0x14] sm:$0xf]
    %v312 = vld [vmem:[#allocation8 + $0x18] sm:$0xf]
    %v313 = vld [vmem:[#allocation8 + $0x1c] sm:$0xf]
    %v314 = vld [vmem:[#allocation8 + $0x20] sm:$0xf]
    %v315 = vld [vmem:[#allocation8 + $0x24] sm:$0xf]
    %v316 = vld [vmem:[#allocation8 + $0x28] sm:$0xf]
    %v317 = vld [vmem:[#allocation8 + $0x2c] sm:$0xf]
    %v318 = vld [vmem:[#allocation8 + $0x30] sm:$0xf]
    %v319 = vld [vmem:[#allocation8 + $0x34] sm:$0xf]
    %v320 = vld [vmem:[#allocation8 + $0x38] sm:$0xf]
    %v321 = vld [vmem:[#allocation8 + $0x3c] sm:$0xf]
    %v322 = vld [vmem:[#allocation5 + $0x2] sm:$0x1]
    %v323 = vpack.c.bf16 %v305, %v305
    %v324 = vlaneseq
    %v325 = vshrl.u32 %v324, 7
    %v326 = vsub.s32 0, %v325
    %v327 = vrot.slane %v322, %v326
    %v344 = vunpack.c.l.b16 %v306
    %v345 = vunpack.c.l.b16 %v307
    %v346 = vunpack.c.l.b16 %v308
    %v347 = vunpack.c.l.b16 %v309
    %v348 = vunpack.c.l.b16 %v310
    %v349 = vunpack.c.l.b16 %v311
    %v350 = vunpack.c.l.b16 %v312
    %v351 = vunpack.c.l.b16 %v313
    %v352 = vunpack.c.l.b16 %v314
    %v353 = vunpack.c.l.b16 %v315
    %v354 = vunpack.c.l.b16 %v316
    %v355 = vunpack.c.l.b16 %v317
    %v356 = vunpack.c.l.b16 %v318
    %v357 = vunpack.c.l.b16 %v319
    %v358 = vunpack.c.l.b16 %v320
    %v359 = vunpack.c.l.b16 %v321
    %v360 = vpack.c.b16 %v345, %v344
    %v361 = vpack.c.b16 %v347, %v346
    %v362 = vpack.c.b16 %v349, %v348
    %v363 = vpack.c.b16 %v351, %v350
    %v364 = vpack.c.b16 %v353, %v352
    %v365 = vpack.c.b16 %v355, %v354
    %v366 = vpack.c.b16 %v357, %v356
    %v367 = vpack.c.b16 %v359, %v358
    %376 = vmatprep.subr.bf16.mxu0 0
    %377 = vmatpush1.bf16.msra.mxu0 %v360
    %378 = vmatprep.subr.bf16.mxu0 0
    %379 = vmatpush1.bf16.msra.mxu0 %v361
    %380 = vmatprep.subr.bf16.mxu0 0
    %381 = vmatpush1.bf16.msra.mxu0 %v362
    %382 = vmatprep.subr.bf16.mxu0 0
    %383 = vmatpush1.bf16.msra.mxu0 %v363
    %384 = vmatprep.subr.bf16.mxu0 0
    %385 = vmatpush1.bf16.msra.mxu0 %v364
    %386 = vmatprep.subr.bf16.mxu0 0
    %387 = vmatpush1.bf16.msra.mxu0 %v365
    %388 = vmatprep.subr.bf16.mxu0 0
    %389 = vmatpush1.bf16.msra.mxu0 %v366
    %390 = vmatprep.subr.bf16.mxu0 0
    %391 = vmatpush1.bf16.msra.mxu0 %v367
    %392 = vmatprep.subr.bf16.mxu0 0
    %393 = vmatpush1.bf16.msra.mxu0 0
    %394 = vmatprep.subr.bf16.mxu0 0
    %395 = vmatpush1.bf16.msra.mxu0 0
    %396 = vmatprep.subr.bf16.mxu0 0
    %397 = vmatpush1.bf16.msra.mxu0 0
    %398 = vmatprep.subr.bf16.mxu0 0
    %399 = vmatpush1.bf16.msra.mxu0 0
    %400 = vmatprep.subr.bf16.mxu0 0
    %401 = vmatpush1.bf16.msra.mxu0 0
    %402 = vmatprep.subr.bf16.mxu0 0
    %403 = vmatpush1.bf16.msra.mxu0 0
    %404 = vmatprep.subr.bf16.mxu0 0
    %405 = vmatpush1.bf16.msra.mxu0 0
    %406 = vmatprep.subr.bf16.mxu0 0
    %407 = vmatpush1.bf16.msra.mxu0 0
    %408 = vmatprep.mubr.bf16.mxu0 0
    %409 = vmatmul.mubr.bf16.gmra.mrb[0].mxu0 %v323
    %v410 = vpop.f32.mrb[0].mxu0
    %v411 = vadd.f32 %v327, %v410
    %v412 = vpop.f32.mrb[0].mxu0
    %v413 = vpop.f32.mrb[0].mxu0
    %v414 = vpop.f32.mrb[0].mxu0
    %415 = vdwg.mxu0
    %v416 = vld [vmem:[#allocation5 + $0x3] sm:$0x1]
    %v417 = vld [vmem:[#allocation5 + $0x4] sm:$0x1]
    %v418 = vadd.f32 %v299, %v411
    %419 = vadd.xlane.f32.xlu0 %v418
    %v420 = vpop.xlane.xlu0 %419
    %v421 = vmul.f32 %v420, 0.03125
    %v422 = vmul.f32 %v418, %v418
    %423 = vadd.xlane.f32.xlu0 %v422
    %v424 = vpop.xlane.xlu0 %423
    %v425 = vmul.f32 %v424, 0.03125
    %v426 = vmul.f32 %v421, %v421
    %v427 = vsub.f32 %v425, %v426
    %v428 = vmax.f32 %v427, 0.0
    %v429 = vsub.f32 %v418, %v421
    %v430 = vadd.f32 %v428, 1e-05
    %v431 = vrsqrt.pop %v430
    %v432 = vmul.f32 %v429, %v431
    %v433 = vlaneseq
    %v434 = vshrl.u32 %v433, 7
    %v435 = vsub.s32 0, %v434
    %v436 = vrot.slane %v416, %v435
    %v437 = vmul.f32 %v432, %v436
    %v438 = vlaneseq
    %v439 = vshrl.u32 %v438, 7
    %v440 = vsub.s32 0, %v439
    %v441 = vrot.slane %v417, %v440
    %v442 = vadd.f32 %v437, %v441
    %v443 = vld [vmem:[#allocation10] sm:$0xf]
    %v444 = vld [vmem:[#allocation10 + $0x4] sm:$0xf]
    %v445 = vld [vmem:[#allocation10 + $0x8] sm:$0xf]
    %v446 = vld [vmem:[#allocation10 + $0xc] sm:$0xf]
    %v447 = vld [vmem:[#allocation10 + $0x10] sm:$0xf]
    %v448 = vld [vmem:[#allocation10 + $0x14] sm:$0xf]
    %v449 = vld [vmem:[#allocation10 + $0x18] sm:$0xf]
    %v450 = vld [vmem:[#allocation10 + $0x1c] sm:$0xf]
    %v451 = vld [vmem:[#allocation10 + $0x20] sm:$0xf]
    %v452 = vld [vmem:[#allocation10 + $0x24] sm:$0xf]
    %v453 = vld [vmem:[#allocation10 + $0x28] sm:$0xf]
    %v454 = vld [vmem:[#allocation10 + $0x2c] sm:$0xf]
    %v455 = vld [vmem:[#allocation10 + $0x30] sm:$0xf]
    %v456 = vld [vmem:[#allocation10 + $0x34] sm:$0xf]
    %v457 = vld [vmem:[#allocation10 + $0x38] sm:$0xf]
    %v458 = vld [vmem:[#allocation10 + $0x3c] sm:$0xf]
    %v459 = vld [vmem:[#allocation5 + $0x5] sm:$0x1]
    %v460 = vld [vmem:[#allocation11] sm:$0xf]
    %v461 = vld [vmem:[#allocation11 + $0x4] sm:$0xf]
    %v462 = vld [vmem:[#allocation11 + $0x8] sm:$0xf]
    %v463 = vld [vmem:[#allocation11 + $0xc] sm:$0xf]
    %v464 = vld [vmem:[#allocation11 + $0x10] sm:$0xf]
    %v465 = vld [vmem:[#allocation11 + $0x14] sm:$0xf]
    %v466 = vld [vmem:[#allocation11 + $0x18] sm:$0xf]
    %v467 = vld [vmem:[#allocation11 + $0x1c] sm:$0xf]
    %v468 = vld [vmem:[#allocation11 + $0x20] sm:$0xf]
    %v469 = vld [vmem:[#allocation11 + $0x24] sm:$0xf]
    %v470 = vld [vmem:[#allocation11 + $0x28] sm:$0xf]
    %v471 = vld [vmem:[#allocation11 + $0x2c] sm:$0xf]
    %v472 = vld [vmem:[#allocation11 + $0x30] sm:$0xf]
    %v473 = vld [vmem:[#allocation11 + $0x34] sm:$0xf]
    %v474 = vld [vmem:[#allocation11 + $0x38] sm:$0xf]
    %v475 = vld [vmem:[#allocation11 + $0x3c] sm:$0xf]
    %v476 = vld [vmem:[#allocation5 + $0x6] sm:$0x1]
    %v477 = vld [vmem:[#allocation5 + $0x7] sm:$0x1]
    %v478 = vld [vmem:[#allocation5 + $0x8] sm:$0x1]
    %v479 = vpack.c.bf16 %v442, %v442
    %v480 = vlaneseq
    %v481 = vshrl.u32 %v480, 7
    %v482 = vsub.s32 0, %v481
    %v483 = vrot.slane %v459, %v482
    %v500 = vunpack.c.l.b16 %v443
    %v501 = vunpack.c.l.b16 %v444
    %v502 = vunpack.c.l.b16 %v445
    %v503 = vunpack.c.l.b16 %v446
    %v504 = vunpack.c.l.b16 %v447
    %v505 = vunpack.c.l.b16 %v448
    %v506 = vunpack.c.l.b16 %v449
    %v507 = vunpack.c.l.b16 %v450
    %v508 = vunpack.c.l.b16 %v451
    %v509 = vunpack.c.l.b16 %v452
    %v510 = vunpack.c.l.b16 %v453
    %v511 = vunpack.c.l.b16 %v454
    %v512 = vunpack.c.l.b16 %v455
    %v513 = vunpack.c.l.b16 %v456
    %v514 = vunpack.c.l.b16 %v457
    %v515 = vunpack.c.l.b16 %v458
    %v516 = vpack.c.b16 %v501, %v500
    %v517 = vpack.c.b16 %v503, %v502
    %v518 = vpack.c.b16 %v505, %v504
    %v519 = vpack.c.b16 %v507, %v506
    %v520 = vpack.c.b16 %v509, %v508
    %v521 = vpack.c.b16 %v511, %v510
    %v522 = vpack.c.b16 %v513, %v512
    %v523 = vpack.c.b16 %v515, %v514
    %532 = vmatprep.subr.bf16.mxu0 0
    %533 = vmatpush1.bf16.msra.mxu0 %v516
    %534 = vmatprep.subr.bf16.mxu0 0
    %535 = vmatpush1.bf16.msra.mxu0 %v517
    %536 = vmatprep.subr.bf16.mxu0 0
    %537 = vmatpush1.bf16.msra.mxu0 %v518
    %538 = vmatprep.subr.bf16.mxu0 0
    %539 = vmatpush1.bf16.msra.mxu0 %v519
    %540 = vmatprep.subr.bf16.mxu0 0
    %541 = vmatpush1.bf16.msra.mxu0 %v520
    %542 = vmatprep.subr.bf16.mxu0 0
    %543 = vmatpush1.bf16.msra.mxu0 %v521
    %544 = vmatprep.subr.bf16.mxu0 0
    %545 = vmatpush1.bf16.msra.mxu0 %v522
    %546 = vmatprep.subr.bf16.mxu0 0
    %547 = vmatpush1.bf16.msra.mxu0 %v523
    %548 = vmatprep.subr.bf16.mxu0 0
    %549 = vmatpush1.bf16.msra.mxu0 0
    %550 = vmatprep.subr.bf16.mxu0 0
    %551 = vmatpush1.bf16.msra.mxu0 0
    %552 = vmatprep.subr.bf16.mxu0 0
    %553 = vmatpush1.bf16.msra.mxu0 0
    %554 = vmatprep.subr.bf16.mxu0 0
    %555 = vmatpush1.bf16.msra.mxu0 0
    %556 = vmatprep.subr.bf16.mxu0 0
    %557 = vmatpush1.bf16.msra.mxu0 0
    %558 = vmatprep.subr.bf16.mxu0 0
    %559 = vmatpush1.bf16.msra.mxu0 0
    %560 = vmatprep.subr.bf16.mxu0 0
    %561 = vmatpush1.bf16.msra.mxu0 0
    %562 = vmatprep.subr.bf16.mxu0 0
    %563 = vmatpush1.bf16.msra.mxu0 0
    %564 = vmatprep.mubr.bf16.mxu0 0
    %565 = vmatmul.mubr.bf16.gmra.mrb[0].mxu0 %v479
    %v566 = vpop.f32.mrb[0].mxu0
    %v567 = vadd.f32 %v483, %v566
    %v568 = vpop.f32.mrb[0].mxu0
    %v569 = vpop.f32.mrb[0].mxu0
    %v570 = vpop.f32.mrb[0].mxu0
    %571 = vdwg.mxu0
    %v572 = vmax.f32 %v567, 0.0
    %v573 = vpack.c.bf16 %v572, %v572
    %v574 = vlaneseq
    %v575 = vshrl.u32 %v574, 7
    %v576 = vsub.s32 0, %v575
    %v577 = vrot.slane %v476, %v576
    %v594 = vunpack.c.l.b16 %v460
    %v595 = vunpack.c.l.b16 %v461
    %v596 = vunpack.c.l.b16 %v462
    %v597 = vunpack.c.l.b16 %v463
    %v598 = vunpack.c.l.b16 %v464
    %v599 = vunpack.c.l.b16 %v465
    %v600 = vunpack.c.l.b16 %v466
    %v601 = vunpack.c.l.b16 %v467
    %v602 = vunpack.c.l.b16 %v468
    %v603 = vunpack.c.l.b16 %v469
    %v604 = vunpack.c.l.b16 %v470
    %v605 = vunpack.c.l.b16 %v471
    %v606 = vunpack.c.l.b16 %v472
    %v607 = vunpack.c.l.b16 %v473
    %v608 = vunpack.c.l.b16 %v474
    %v609 = vunpack.c.l.b16 %v475
    %v610 = vpack.c.b16 %v595, %v594
    %v611 = vpack.c.b16 %v597, %v596
    %v612 = vpack.c.b16 %v599, %v598
    %v613 = vpack.c.b16 %v601, %v600
    %v614 = vpack.c.b16 %v603, %v602
    %v615 = vpack.c.b16 %v605, %v604
    %v616 = vpack.c.b16 %v607, %v606
    %v617 = vpack.c.b16 %v609, %v608
    %626 = vmatprep.subr.bf16.mxu0 0
    %627 = vmatpush1.bf16.msra.mxu0 %v610
    %628 = vmatprep.subr.bf16.mxu0 0
    %629 = vmatpush1.bf16.msra.mxu0 %v611
    %630 = vmatprep.subr.bf16.mxu0 0
    %631 = vmatpush1.bf16.msra.mxu0 %v612
    %632 = vmatprep.subr.bf16.mxu0 0
    %633 = vmatpush1.bf16.msra.mxu0 %v613
    %634 = vmatprep.subr.bf16.mxu0 0
    %635 = vmatpush1.bf16.msra.mxu0 %v614
    %636 = vmatprep.subr.bf16.mxu0 0
    %637 = vmatpush1.bf16.msra.mxu0 %v615
    %638 = vmatprep.subr.bf16.mxu0 0
    %639 = vmatpush1.bf16.msra.mxu0 %v616
    %640 = vmatprep.subr.bf16.mxu0 0
    %641 = vmatpush1.bf16.msra.mxu0 %v617
    %642 = vmatprep.subr.bf16.mxu0 0
    %643 = vmatpush1.bf16.msra.mxu0 0
    %644 = vmatprep.subr.bf16.mxu0 0
    %645 = vmatpush1.bf16.msra.mxu0 0
    %646 = vmatprep.subr.bf16.mxu0 0
    %647 = vmatpush1.bf16.msra.mxu0 0
    %648 = vmatprep.subr.bf16.mxu0 0
    %649 = vmatpush1.bf16.msra.mxu0 0
    %650 = vmatprep.subr.bf16.mxu0 0
    %651 = vmatpush1.bf16.msra.mxu0 0
    %652 = vmatprep.subr.bf16.mxu0 0
    %653 = vmatpush1.bf16.msra.mxu0 0
    %654 = vmatprep.subr.bf16.mxu0 0
    %655 = vmatpush1.bf16.msra.mxu0 0
    %656 = vmatprep.subr.bf16.mxu0 0
    %657 = vmatpush1.bf16.msra.mxu0 0
    %658 = vmatprep.mubr.bf16.mxu0 0
    %659 = vmatmul.mubr.bf16.gmra.mrb[0].mxu0 %v573
    %v660 = vpop.f32.mrb[0].mxu0
    %v661 = vadd.f32 %v577, %v660
    %v662 = vpop.f32.mrb[0].mxu0
    %v663 = vpop.f32.mrb[0].mxu0
    %v664 = vpop.f32.mrb[0].mxu0
    %665 = vdwg.mxu0
    %v666 = vadd.f32 %v442, %v661
    %667 = vadd.xlane.f32.xlu0 %v666
    %v668 = vpop.xlane.xlu0 %667
    %v669 = vmul.f32 %v668, 0.03125
    %v670 = vmul.f32 %v666, %v666
    %671 = vadd.xlane.f32.xlu0 %v670
    %v672 = vpop.xlane.xlu0 %671
    %v673 = vmul.f32 %v672, 0.03125
    %v674 = vmul.f32 %v669, %v669
    %v675 = vsub.f32 %v673, %v674
    %v676 = vmax.f32 %v675, 0.0
    %v677 = vsub.f32 %v666, %v669
    %v678 = vadd.f32 %v676, 1e-05
    %v679 = vrsqrt.pop %v678
    %v680 = vmul.f32 %v677, %v679
    %v681 = vlaneseq
    %v682 = vshrl.u32 %v681, 7
    %v683 = vsub.s32 0, %v682
    %v684 = vrot.slane %v477, %v683
    %v685 = vmul.f32 %v680, %v684
    %v686 = vlaneseq
    %v687 = vshrl.u32 %v686, 7
    %v688 = vsub.s32 0, %v687
    %v689 = vrot.slane %v478, %v688
    %v690 = vadd.f32 %v685, %v689
    %v691 = vld [vmem:[#allocation13] sm:$0xf]
    %v692 = vld [vmem:[#allocation13 + $0x4] sm:$0xf]
    %v693 = vld [vmem:[#allocation13 + $0x8] sm:$0xf]
    %v694 = vld [vmem:[#allocation13 + $0xc] sm:$0xf]
    %v695 = vld [vmem:[#allocation13 + $0x10] sm:$0xf]
    %v696 = vld [vmem:[#allocation13 + $0x14] sm:$0xf]
    %v697 = vld [vmem:[#allocation13 + $0x18] sm:$0xf]
    %v698 = vld [vmem:[#allocation13 + $0x1c] sm:$0xf]
    %v699 = vld [vmem:[#allocation13 + $0x20] sm:$0xf]
    %v700 = vld [vmem:[#allocation13 + $0x24] sm:$0xf]
    %v701 = vld [vmem:[#allocation13 + $0x28] sm:$0xf]
    %v702 = vld [vmem:[#allocation13 + $0x2c] sm:$0xf]
    %v703 = vld [vmem:[#allocation13 + $0x30] sm:$0xf]
    %v704 = vld [vmem:[#allocation13 + $0x34] sm:$0xf]
    %v705 = vld [vmem:[#allocation13 + $0x38] sm:$0xf]
    %v706 = vld [vmem:[#allocation13 + $0x3c] sm:$0xf]
    %v707 = vld [vmem:[#allocation5 + $0x9] sm:$0x1]
    %v708 = vld [vmem:[#allocation14] sm:$0xf]
    %v709 = vld [vmem:[#allocation14 + $0x4] sm:$0xf]
    %v710 = vld [vmem:[#allocation14 + $0x8] sm:$0xf]
    %v711 = vld [vmem:[#allocation14 + $0xc] sm:$0xf]
    %v712 = vld [vmem:[#allocation14 + $0x10] sm:$0xf]
    %v713 = vld [vmem:[#allocation14 + $0x14] sm:$0xf]
    %v714 = vld [vmem:[#allocation14 + $0x18] sm:$0xf]
    %v715 = vld [vmem:[#allocation14 + $0x1c] sm:$0xf]
    %v716 = vld [vmem:[#allocation14 + $0x20] sm:$0xf]
    %v717 = vld [vmem:[#allocation14 + $0x24] sm:$0xf]
    %v718 = vld [vmem:[#allocation14 + $0x28] sm:$0xf]
    %v719 = vld [vmem:[#allocation14 + $0x2c] sm:$0xf]
    %v720 = vld [vmem:[#allocation14 + $0x30] sm:$0xf]
    %v721 = vld [vmem:[#allocation14 + $0x34] sm:$0xf]
    %v722 = vld [vmem:[#allocation14 + $0x38] sm:$0xf]
    %v723 = vld [vmem:[#allocation14 + $0x3c] sm:$0xf]
    %v724 = vld [vmem:[#allocation5 + $0xa] sm:$0x1]
    %v725 = vld [vmem:[#allocation5 + $0xb] sm:$0x1]
    %v726 = vld [vmem:[#allocation5 + $0xc] sm:$0x1]
    %v727 = vpack.c.bf16 %v690, %v690
    %v728 = vlaneseq
    %v729 = vshrl.u32 %v728, 7
    %v730 = vsub.s32 0, %v729
    %v731 = vrot.slane %v707, %v730
    %v748 = vunpack.c.l.b16 %v691
    %v749 = vunpack.c.l.b16 %v692
    %v750 = vunpack.c.l.b16 %v693
    %v751 = vunpack.c.l.b16 %v694
    %v752 = vunpack.c.l.b16 %v695
    %v753 = vunpack.c.l.b16 %v696
    %v754 = vunpack.c.l.b16 %v697
    %v755 = vunpack.c.l.b16 %v698
    %v756 = vunpack.c.l.b16 %v699
    %v757 = vunpack.c.l.b16 %v700
    %v758 = vunpack.c.l.b16 %v701
    %v759 = vunpack.c.l.b16 %v702
    %v760 = vunpack.c.l.b16 %v703
    %v761 = vunpack.c.l.b16 %v704
    %v762 = vunpack.c.l.b16 %v705
    %v763 = vunpack.c.l.b16 %v706
    %v764 = vpack.c.b16 %v749, %v748
    %v765 = vpack.c.b16 %v751, %v750
    %v766 = vpack.c.b16 %v753, %v752
    %v767 = vpack.c.b16 %v755, %v754
    %v768 = vpack.c.b16 %v757, %v756
    %v769 = vpack.c.b16 %v759, %v758
    %v770 = vpack.c.b16 %v761, %v760
    %v771 = vpack.c.b16 %v763, %v762
    %780 = vmatprep.subr.bf16.mxu0 0
    %781 = vmatpush1.bf16.msra.mxu0 %v764
    %782 = vmatprep.subr.bf16.mxu0 0
    %783 = vmatpush1.bf16.msra.mxu0 %v765
    %784 = vmatprep.subr.bf16.mxu0 0
    %785 = vmatpush1.bf16.msra.mxu0 %v766
    %786 = vmatprep.subr.bf16.mxu0 0
    %787 = vmatpush1.bf16.msra.mxu0 %v767
    %788 = vmatprep.subr.bf16.mxu0 0
    %789 = vmatpush1.bf16.msra.mxu0 %v768
    %790 = vmatprep.subr.bf16.mxu0 0
    %791 = vmatpush1.bf16.msra.mxu0 %v769
    %792 = vmatprep.subr.bf16.mxu0 0
    %793 = vmatpush1.bf16.msra.mxu0 %v770
    %794 = vmatprep.subr.bf16.mxu0 0
    %795 = vmatpush1.bf16.msra.mxu0 %v771
    %796 = vmatprep.subr.bf16.mxu0 0
    %797 = vmatpush1.bf16.msra.mxu0 0
    %798 = vmatprep.subr.bf16.mxu0 0
    %799 = vmatpush1.bf16.msra.mxu0 0
    %800 = vmatprep.subr.bf16.mxu0 0
    %801 = vmatpush1.bf16.msra.mxu0 0
    %802 = vmatprep.subr.bf16.mxu0 0
    %803 = vmatpush1.bf16.msra.mxu0 0
    %804 = vmatprep.subr.bf16.mxu0 0
    %805 = vmatpush1.bf16.msra.mxu0 0
    %806 = vmatprep.subr.bf16.mxu0 0
    %807 = vmatpush1.bf16.msra.mxu0 0
    %808 = vmatprep.subr.bf16.mxu0 0
    %809 = vmatpush1.bf16.msra.mxu0 0
    %810 = vmatprep.subr.bf16.mxu0 0
    %811 = vmatpush1.bf16.msra.mxu0 0
    %812 = vmatprep.mubr.bf16.mxu0 0
    %813 = vmatmul.mubr.bf16.gmra.mrb[0].mxu0 %v727
    %v814 = vpop.f32.mrb[0].mxu0
    %v815 = vadd.f32 %v731, %v814
    %v816 = vpop.f32.mrb[0].mxu0
    %v817 = vpop.f32.mrb[0].mxu0
    %v818 = vpop.f32.mrb[0].mxu0
    %819 = vdwg.mxu0
    %v820 = vmax.f32 %v815, 0.0
    %v821 = vpack.c.bf16 %v820, %v820
    %v822 = vlaneseq
    %v823 = vshrl.u32 %v822, 7
    %v824 = vsub.s32 0, %v823
    %v825 = vrot.slane %v724, %v824
    %v842 = vunpack.c.l.b16 %v708
    %v843 = vunpack.c.l.b16 %v709
    %v844 = vunpack.c.l.b16 %v710
    %v845 = vunpack.c.l.b16 %v711
    %v846 = vunpack.c.l.b16 %v712
    %v847 = vunpack.c.l.b16 %v713
    %v848 = vunpack.c.l.b16 %v714
    %v849 = vunpack.c.l.b16 %v715
    %v850 = vunpack.c.l.b16 %v716
    %v851 = vunpack.c.l.b16 %v717
    %v852 = vunpack.c.l.b16 %v718
    %v853 = vunpack.c.l.b16 %v719
    %v854 = vunpack.c.l.b16 %v720
    %v855 = vunpack.c.l.b16 %v721
    %v856 = vunpack.c.l.b16 %v722
    %v857 = vunpack.c.l.b16 %v723
    %v858 = vpack.c.b16 %v843, %v842
    %v859 = vpack.c.b16 %v845, %v844
    %v860 = vpack.c.b16 %v847, %v846
    %v861 = vpack.c.b16 %v849, %v848
    %v862 = vpack.c.b16 %v851, %v850
    %v863 = vpack.c.b16 %v853, %v852
    %v864 = vpack.c.b16 %v855, %v854
    %v865 = vpack.c.b16 %v857, %v856
    %874 = vmatprep.subr.bf16.mxu0 0
    %875 = vmatpush1.bf16.msra.mxu0 %v858
    %876 = vmatprep.subr.bf16.mxu0 0
    %877 = vmatpush1.bf16.msra.mxu0 %v859
    %878 = vmatprep.subr.bf16.mxu0 0
    %879 = vmatpush1.bf16.msra.mxu0 %v860
    %880 = vmatprep.subr.bf16.mxu0 0
    %881 = vmatpush1.bf16.msra.mxu0 %v861
    %882 = vmatprep.subr.bf16.mxu0 0
    %883 = vmatpush1.bf16.msra.mxu0 %v862
    %884 = vmatprep.subr.bf16.mxu0 0
    %885 = vmatpush1.bf16.msra.mxu0 %v863
    %886 = vmatprep.subr.bf16.mxu0 0
    %887 = vmatpush1.bf16.msra.mxu0 %v864
    %888 = vmatprep.subr.bf16.mxu0 0
    %889 = vmatpush1.bf16.msra.mxu0 %v865
    %890 = vmatprep.subr.bf16.mxu0 0
    %891 = vmatpush1.bf16.msra.mxu0 0
    %892 = vmatprep.subr.bf16.mxu0 0
    %893 = vmatpush1.bf16.msra.mxu0 0
    %894 = vmatprep.subr.bf16.mxu0 0
    %895 = vmatpush1.bf16.msra.mxu0 0
    %896 = vmatprep.subr.bf16.mxu0 0
    %897 = vmatpush1.bf16.msra.mxu0 0
    %898 = vmatprep.subr.bf16.mxu0 0
    %899 = vmatpush1.bf16.msra.mxu0 0
    %900 = vmatprep.subr.bf16.mxu0 0
    %901 = vmatpush1.bf16.msra.mxu0 0
    %902 = vmatprep.subr.bf16.mxu0 0
    %903 = vmatpush1.bf16.msra.mxu0 0
    %904 = vmatprep.subr.bf16.mxu0 0
    %905 = vmatpush1.bf16.msra.mxu0 0
    %906 = vmatprep.mubr.bf16.mxu0 0
    %907 = vmatmul.mubr.bf16.gmra.mrb[0].mxu0 %v821
    %v908 = vpop.f32.mrb[0].mxu0
    %v909 = vadd.f32 %v825, %v908
    %v910 = vpop.f32.mrb[0].mxu0
    %v911 = vpop.f32.mrb[0].mxu0
    %v912 = vpop.f32.mrb[0].mxu0
    %913 = vdwg.mxu0
    %v914 = vadd.f32 %v690, %v909
    %915 = vadd.xlane.f32.xlu0 %v914
    %v916 = vpop.xlane.xlu0 %915
    %v917 = vmul.f32 %v916, 0.03125
    %v918 = vmul.f32 %v914, %v914
    %919 = vadd.xlane.f32.xlu0 %v918
    %v920 = vpop.xlane.xlu0 %919
    %v921 = vmul.f32 %v920, 0.03125
    %v922 = vmul.f32 %v917, %v917
    %v923 = vsub.f32 %v921, %v922
    %v924 = vmax.f32 %v923, 0.0
    %v925 = vsub.f32 %v914, %v917
    %v926 = vadd.f32 %v924, 1e-05
    %v927 = vrsqrt.pop %v926
    %v928 = vmul.f32 %v925, %v927
    %v929 = vlaneseq
    %v930 = vshrl.u32 %v929, 7
    %v931 = vsub.s32 0, %v930
    %v932 = vrot.slane %v725, %v931
    %v933 = vmul.f32 %v928, %v932
    %v934 = vlaneseq
    %v935 = vshrl.u32 %v934, 7
    %v936 = vsub.s32 0, %v935
    %v937 = vrot.slane %v726, %v936
    %v938 = vadd.f32 %v933, %v937
    %v939 = vld [vmem:[#allocation16] sm:$0xf]
    %v940 = vld [vmem:[#allocation16 + $0x4] sm:$0xf]
    %v941 = vld [vmem:[#allocation16 + $0x8] sm:$0xf]
    %v942 = vld [vmem:[#allocation16 + $0xc] sm:$0xf]
    %v943 = vld [vmem:[#allocation16 + $0x10] sm:$0xf]
    %v944 = vld [vmem:[#allocation16 + $0x14] sm:$0xf]
    %v945 = vld [vmem:[#allocation16 + $0x18] sm:$0xf]
    %v946 = vld [vmem:[#allocation16 + $0x1c] sm:$0xf]
    %v947 = vld [vmem:[#allocation16 + $0x20] sm:$0xf]
    %v948 = vld [vmem:[#allocation16 + $0x24] sm:$0xf]
    %v949 = vld [vmem:[#allocation16 + $0x28] sm:$0xf]
    %v950 = vld [vmem:[#allocation16 + $0x2c] sm:$0xf]
    %v951 = vld [vmem:[#allocation16 + $0x30] sm:$0xf]
    %v952 = vld [vmem:[#allocation16 + $0x34] sm:$0xf]
    %v953 = vld [vmem:[#allocation16 + $0x38] sm:$0xf]
    %v954 = vld [vmem:[#allocation16 + $0x3c] sm:$0xf]
    %v955 = vld [vmem:[#allocation5 + $0xd] sm:$0x1]
    %v956 = vpack.c.bf16 %v938, %v938
    %v957 = vlaneseq
    %v958 = vshrl.u32 %v957, 7
    %v959 = vsub.s32 0, %v958
    %v960 = vrot.slane %v955, %v959
    %v977 = vunpack.c.l.b16 %v939
    %v978 = vunpack.c.l.b16 %v940
    %v979 = vunpack.c.l.b16 %v941
    %v980 = vunpack.c.l.b16 %v942
    %v981 = vunpack.c.l.b16 %v943
    %v982 = vunpack.c.l.b16 %v944
    %v983 = vunpack.c.l.b16 %v945
    %v984 = vunpack.c.l.b16 %v946
    %v985 = vunpack.c.l.b16 %v947
    %v986 = vunpack.c.l.b16 %v948
    %v987 = vunpack.c.l.b16 %v949
    %v988 = vunpack.c.l.b16 %v950
    %v989 = vunpack.c.l.b16 %v951
    %v990 = vunpack.c.l.b16 %v952
    %v991 = vunpack.c.l.b16 %v953
    %v992 = vunpack.c.l.b16 %v954
    %v993 = vpack.c.b16 %v978, %v977
    %v994 = vpack.c.b16 %v980, %v979
    %v995 = vpack.c.b16 %v982, %v981
    %v996 = vpack.c.b16 %v984, %v983
    %v997 = vpack.c.b16 %v986, %v985
    %v998 = vpack.c.b16 %v988, %v987
    %v999 = vpack.c.b16 %v990, %v989
    %v1000 = vpack.c.b16 %v992, %v991
    %1009 = vmatprep.subr.bf16.mxu0 0
    %1010 = vmatpush1.bf16.msra.mxu0 %v993
    %1011 = vmatprep.subr.bf16.mxu0 0
    %1012 = vmatpush1.bf16.msra.mxu0 %v994
    %1013 = vmatprep.subr.bf16.mxu0 0
    %1014 = vmatpush1.bf16.msra.mxu0 %v995
    %1015 = vmatprep.subr.bf16.mxu0 0
    %1016 = vmatpush1.bf16.msra.mxu0 %v996
    %1017 = vmatprep.subr.bf16.mxu0 0
    %1018 = vmatpush1.bf16.msra.mxu0 %v997
    %1019 = vmatprep.subr.bf16.mxu0 0
    %1020 = vmatpush1.bf16.msra.mxu0 %v998
    %1021 = vmatprep.subr.bf16.mxu0 0
    %1022 = vmatpush1.bf16.msra.mxu0 %v999
    %1023 = vmatprep.subr.bf16.mxu0 0
    %1024 = vmatpush1.bf16.msra.mxu0 %v1000
    %1025 = vmatprep.subr.bf16.mxu0 0
    %1026 = vmatpush1.bf16.msra.mxu0 0
    %1027 = vmatprep.subr.bf16.mxu0 0
    %1028 = vmatpush1.bf16.msra.mxu0 0
    %1029 = vmatprep.subr.bf16.mxu0 0
    %1030 = vmatpush1.bf16.msra.mxu0 0
    %1031 = vmatprep.subr.bf16.mxu0 0
    %1032 = vmatpush1.bf16.msra.mxu0 0
    %1033 = vmatprep.subr.bf16.mxu0 0
    %1034 = vmatpush1.bf16.msra.mxu0 0
    %1035 = vmatprep.subr.bf16.mxu0 0
    %1036 = vmatpush1.bf16.msra.mxu0 0
    %1037 = vmatprep.subr.bf16.mxu0 0
    %1038 = vmatpush1.bf16.msra.mxu0 0
    %1039 = vmatprep.subr.bf16.mxu0 0
    %1040 = vmatpush1.bf16.msra.mxu0 0
    %1041 = vmatprep.mubr.bf16.mxu0 0
    %1042 = vmatmul.mubr.bf16.gmra.mrb[0].mxu0 %v956
    %v1043 = vpop.f32.mrb[0].mxu0
    %v1044 = vadd.f32 %v960, %v1043
    %v1045 = vpop.f32.mrb[0].mxu0
    %v1046 = vpop.f32.mrb[0].mxu0
    %v1047 = vpop.f32.mrb[0].mxu0
    %1048 = vdwg.mxu0
    %1049 = vst [vmem:[#allocation17] sm:$0xff] %v1044
    // Predicated region
    $region74: #{tpu_custom_call.1} parent=1 // pred_check
      _
    $region75: #{tpu_custom_call.1} parent=1 // pred_check_branch
      %1051 = sbr.rel (0) target = $region77
    $region76: #{tpu_custom_call.1} parent=1 // pred_region
      %s1053 = ssub.s32 128, 128
      %1054 = vsyncadd [#allocation4], %s1053
      %s1056 = sshll.u32 [#allocation17], 4
      %s1057 = int_to_ptr.vmem [resolvable:$true] %s1056
      %1059 = dma.vmem_to_hbm [thread:$0]  %s1057, 128, %s9, [#allocation4]
    $region77: #{tpu_custom_call.1} parent=1 // pred_fallthru
      _
    // Predicated region
    $region78: #{tpu_custom_call.1} parent=1 // pred_check
      _
    $region79: #{tpu_custom_call.1} parent=1 // pred_check_branch
      %1061 = sbr.rel (0) target = $region81
    $region80: #{tpu_custom_call.1} parent=1 // pred_region
      %1062 = dma.done [#allocation4], 128
    $region81: #{tpu_custom_call.1} parent=1 // pred_fallthru
      _
    %1063 = vsyncpa [#allocation3], 1
    %1064 = vsyncpa [#allocation6], 1
    %1065 = vsyncpa [#allocation9], 1
    %1066 = vsyncpa [#allocation12], 1
    %1067 = vsyncpa [#allocation15], 1
    %1068 = vsyncpa [#allocation4], 1

</llo_original>
